<compile_context>
chip_gen: v6e
topology: v6e:2x2x1
jax: 0.10.0
libtpu: 0.0.40
codegen_flags: <defaults>
</compile_context>

<pallas_src>
import functools

import jax
import jax.numpy as jnp
from jax.experimental import pallas as pl
from jax.experimental.pallas import tpu as pltpu


def _round_up(x: int, m: int) -> int:
    return ((x + m - 1) // m) * m


# ---- shared-range-reduction sincos (f32, pure VPU ops) ----------------------
_TWO_OVER_PI = 0.63661977236758134308
# pi/2 split into three low-bit-count parts (2x the Cephes pi/4 split).
_PIO2_1 = 1.5703125
_PIO2_2 = 4.837512969970703125e-4
_PIO2_3 = 7.54978995489188216e-8
# Cephes sinf/cosf polynomial coefficients on [-pi/4, pi/4].
_S1, _S2, _S3 = -1.6666654611e-1, 8.3321608736e-3, -1.9515295891e-4
_C2, _C3, _C4 = 4.166664568298827e-2, -1.388731625493765e-3, 2.443315711809948e-5


def _sincos(x):
    """Returns (sin(x), cos(x)) in f32 with one shared range reduction."""
    # Nearest multiple of pi/2 (x >= 0 for rotary positions, so floor(x+.5) is fine).
    q = jnp.floor(x * _TWO_OVER_PI + 0.5)
    r = x - q * _PIO2_1
    r = r - q * _PIO2_2
    r = r - q * _PIO2_3                       # r in (-pi/4, pi/4]
    z = r * r
    s = r + r * z * (_S1 + z * (_S2 + z * _S3))
    c = 1.0 - 0.5 * z + z * z * (_C2 + z * (_C3 + z * _C4))
    qi = q.astype(jnp.int32)
    odd = (qi & 1) == 1
    sin_v = jnp.where(odd, c, s)
    cos_v = jnp.where(odd, s, c)
    sin_v = jnp.where((qi & 2) != 0, -sin_v, sin_v)
    cos_v = jnp.where(((qi + 1) & 2) != 0, -cos_v, cos_v)
    return sin_v, cos_v


def rope_kernel(invf_ref, pos_ref, cos_ref, sin_ref, *, scale, duplicate_half):
    # invf_ref: (1, half) f32 when duplicate_half else (1, D) f32 (already cat(f, f)).
    # pos_ref:  (tm, 1) f32 -- flattened position ids for this token tile.
    pos = pos_ref[...]                        # (tm, 1)
    invf = invf_ref[...]                      # (1, half | D)
    x = pos * invf                            # broadcasted outer product (VPU)
    s, c = _sincos(x)                         # shared range reduction + 2 polynomials
    if duplicate_half:                        # cat along lanes (head_dim >= 256 path)
        s = jnp.concatenate([s, s], axis=-1)
        c = jnp.concatenate([c, c], axis=-1)
    if scale != 1.0:                          # skipped entirely for default rope_type
        s = s * scale
        c = c * scale
    cos_ref[...] = c.astype(cos_ref.dtype)
    sin_ref[...] = s.astype(sin_ref.dtype)


def qwen2_rotary_embedding(position_ids, inv_freq, attention_scaling=1.0, *, tm=2048):
    """position_ids: [B, S] int; inv_freq: [dim/2] f32.
    Returns (cos, sin), each [B, S, dim] bfloat16."""
    B, S = position_ids.shape
    half = int(inv_freq.shape[0])
    D = 2 * half                              # head_dim; multiple of 128 for Qwen2
    M = B * S
    M_pad = _round_up(M, 16)                  # bf16 sublane packing only -- no tm-multiple padding

    # Tile selection: large 16-aligned row tiles, balanced across blocks, and
    # at least 2 grid steps whenever possible (v7x dual-TC sharding).
    desired = max(16, min(_round_up(int(tm), 16), 2048))
    n_blocks = pl.cdiv(M_pad, desired)
    if M_pad >= 32:
        n_blocks = max(n_blocks, 2)
    tm = _round_up(pl.cdiv(M_pad, n_blocks), 16)
    grid = pl.cdiv(M_pad, tm)                 # last block may be partial; Pallas masks it

    pos = position_ids.reshape(M).astype(jnp.float32)
    if M_pad != M:
        pos = jnp.pad(pos, (0, M_pad - M))
    pos = pos.reshape(M_pad, 1)

    # Fold emb = cat(freqs, freqs) into the frequency row. If D/2 is itself
    # lane-dense (multiple of 128), keep the half row and duplicate in-kernel
    # after sincos, halving the dominant polynomial work.
    duplicate_half = (half % 128 == 0)
    if duplicate_half:
        invf = inv_freq.astype(jnp.float32).reshape(1, half)
        invf_block = (1, half)
    else:
        invf = jnp.concatenate([inv_freq, inv_freq]).astype(jnp.float32).reshape(1, D)
        invf_block = (1, D)

    kernel = functools.partial(
        rope_kernel, scale=float(attention_scaling), duplicate_half=duplicate_half)

    cos, sin = pl.pallas_call(
        kernel,
        out_shape=(
            jax.ShapeDtypeStruct((M_pad, D), jnp.bfloat16),
            jax.ShapeDtypeStruct((M_pad, D), jnp.bfloat16),
        ),
        grid_spec=pltpu.PrefetchScalarGridSpec(
            num_scalar_prefetch=0,
            grid=(grid,),
            in_specs=[
                pl.BlockSpec(invf_block, lambda i: (0, 0)),   # grid-invariant freq row
                pl.BlockSpec((tm, 1), lambda i: (i, 0)),      # token tile of positions
            ],
            out_specs=[
                pl.BlockSpec((tm, D), lambda i: (i, 0)),      # cos tile (lane-dense)
                pl.BlockSpec((tm, D), lambda i: (i, 0)),      # sin tile (lane-dense)
            ],
        ),
        compiler_params=pltpu.CompilerParams(
            dimension_semantics=("parallel",)),
        cost_estimate=pl.CostEstimate(
            flops=30 * M_pad * D,                 # shared sincos polynomial work (VPU)
            transcendentals=0,
            bytes_accessed=2 * M_pad * D * 2 + M_pad * 4 + D * 4,
        ),
    )(invf, pos)

    if M_pad != M:                                # no-op when M is 16-aligned
        cos = cos[:M]
        sin = sin[:M]
    return cos.reshape(B, S, D), sin.reshape(B, S, D)


def qwen2_rotary_embedding_ref(position_ids, inv_freq, attention_scaling=1.0):
    pos = position_ids.astype(jnp.float32)                       # [B, S]
    freqs = pos[..., None] * inv_freq[None, None, :]             # [B, S, dim/2]
    emb = jnp.concatenate([freqs, freqs], axis=-1)               # [B, S, dim]
    cos = (jnp.cos(emb) * attention_scaling).astype(jnp.bfloat16)
    sin = (jnp.sin(emb) * attention_scaling).astype(jnp.bfloat16)
    return cos, sin


if __name__ == "__main__":
    # Small Qwen2-consistent config: batch=2, seq=8, head_dim=128 (dim/2=64).
    B, S = 2, 8
    head_dim = 128
    base = 10000.0
    attention_scaling = 1.0   # default rope_type

    key = jax.random.PRNGKey(0)
    position_ids = jax.random.randint(key, (B, S), 0, 2048, dtype=jnp.int32)

    # Default RoPE init: inv_freq = 1 / base**(arange(0, dim, 2) / dim)
    inv_freq = 1.0 / (base ** (jnp.arange(0, head_dim, 2, dtype=jnp.float32) / head_dim))

    cos, sin = qwen2_rotary_embedding(position_ids, inv_freq, attention_scaling)
    cos, sin = jax.block_until_ready((cos, sin))

    cos_ref, sin_ref = qwen2_rotary_embedding_ref(position_ids, inv_freq, attention_scaling)

    assert cos.shape == (B, S, head_dim) and cos.dtype == jnp.bfloat16
    assert sin.shape == (B, S, head_dim) and sin.dtype == jnp.bfloat16
    assert jnp.allclose(cos.astype(jnp.float32), cos_ref.astype(jnp.float32),
                        atol=2e-2, rtol=2e-2), "cos mismatch vs reference"
    assert jnp.allclose(sin.astype(jnp.float32), sin_ref.astype(jnp.float32),
                        atol=2e-2, rtol=2e-2), "sin mismatch vs reference"

    print("KERNEL_OK")
</pallas_src>

<mosaic_0001>
module attributes {stable_mosaic.version = 11 : i64} {
  func.func @rope_kernel(%arg0: i32, %arg1: memref<1x128xf32, #tpu.memory_space<vmem>>, %arg2: memref<16x1xf32, #tpu.memory_space<vmem>>, %arg3: memref<16x128xbf16, #tpu.memory_space<vmem>>, %arg4: memref<16x128xbf16, #tpu.memory_space<vmem>>) attributes {dimension_semantics = [#tpu.dimension_semantics<parallel>], iteration_bounds = array<i64: 1>, scalar_prefetch = 0 : i64, scratch_operands = 0 : i64, tpu.core_type = #tpu.core_type<tc>, window_params = [{pipeline_mode = #tpu.pipeline_mode<synchronous>, transform_indices = @transform_0, window_bounds = array<i64: 1, 128>}, {transform_indices = @transform_1, window_bounds = array<i64: 16, 1>}, {transform_indices = @transform_2, window_bounds = array<i64: 16, 128>}, {transform_indices = @transform_3, window_bounds = array<i64: 16, 128>}]} {
    %c0 = arith.constant 0 : index
    %c0_0 = arith.constant 0 : index
    %0 = vector.load %arg2[%c0, %c0_0] : memref<16x1xf32, #tpu.memory_space<vmem>>, vector<16x1xf32>
    %c0_1 = arith.constant 0 : index
    %c0_2 = arith.constant 0 : index
    %1 = vector.load %arg1[%c0_1, %c0_2] : memref<1x128xf32, #tpu.memory_space<vmem>>, vector<1x128xf32>
    %2 = vector.broadcast %0 : vector<16x1xf32> to vector<16x128xf32>
    %3 = vector.broadcast %1 : vector<1x128xf32> to vector<16x128xf32>
    %4 = arith.mulf %2, %3 : vector<16x128xf32>
    %cst = arith.constant 0.636619746 : f32
    %5 = vector.broadcast %cst : f32 to vector<16x128xf32>
    %6 = arith.mulf %4, %5 : vector<16x128xf32>
    %cst_3 = arith.constant 5.000000e-01 : f32
    %7 = vector.broadcast %cst_3 : f32 to vector<16x128xf32>
    %8 = arith.addf %6, %7 : vector<16x128xf32>
    %9 = math.floor %8 : vector<16x128xf32>
    %cst_4 = arith.constant 1.5703125 : f32
    %10 = vector.broadcast %cst_4 : f32 to vector<16x128xf32>
    %11 = arith.mulf %9, %10 : vector<16x128xf32>
    %12 = arith.subf %4, %11 : vector<16x128xf32>
    %cst_5 = arith.constant 4.83751297E-4 : f32
    %13 = vector.broadcast %cst_5 : f32 to vector<16x128xf32>
    %14 = arith.mulf %9, %13 : vector<16x128xf32>
    %15 = arith.subf %12, %14 : vector<16x128xf32>
    %cst_6 = arith.constant 7.549790e-08 : f32
    %16 = vector.broadcast %cst_6 : f32 to vector<16x128xf32>
    %17 = arith.mulf %9, %16 : vector<16x128xf32>
    %18 = arith.subf %15, %17 : vector<16x128xf32>
    %19 = arith.mulf %18, %18 : vector<16x128xf32>
    %20 = arith.mulf %18, %19 : vector<16x128xf32>
    %cst_7 = arith.constant -1.95152956E-4 : f32
    %21 = vector.broadcast %cst_7 : f32 to vector<16x128xf32>
    %22 = arith.mulf %19, %21 : vector<16x128xf32>
    %cst_8 = arith.constant 0.00833216123 : f32
    %23 = vector.broadcast %cst_8 : f32 to vector<16x128xf32>
    %24 = arith.addf %23, %22 : vector<16x128xf32>
    %25 = arith.mulf %19, %24 : vector<16x128xf32>
    %cst_9 = arith.constant -0.166666552 : f32
    %26 = vector.broadcast %cst_9 : f32 to vector<16x128xf32>
    %27 = arith.addf %26, %25 : vector<16x128xf32>
    %28 = arith.mulf %20, %27 : vector<16x128xf32>
    %29 = arith.addf %18, %28 : vector<16x128xf32>
    %cst_10 = arith.constant 5.000000e-01 : f32
    %30 = vector.broadcast %cst_10 : f32 to vector<16x128xf32>
    %31 = arith.mulf %30, %19 : vector<16x128xf32>
    %cst_11 = arith.constant 1.000000e+00 : f32
    %32 = vector.broadcast %cst_11 : f32 to vector<16x128xf32>
    %33 = arith.subf %32, %31 : vector<16x128xf32>
    %34 = arith.mulf %19, %19 : vector<16x128xf32>
    %cst_12 = arith.constant 2.44331568E-5 : f32
    %35 = vector.broadcast %cst_12 : f32 to vector<16x128xf32>
    %36 = arith.mulf %19, %35 : vector<16x128xf32>
    %cst_13 = arith.constant -0.00138873165 : f32
    %37 = vector.broadcast %cst_13 : f32 to vector<16x128xf32>
    %38 = arith.addf %37, %36 : vector<16x128xf32>
    %39 = arith.mulf %19, %38 : vector<16x128xf32>
    %cst_14 = arith.constant 0.0416666456 : f32
    %40 = vector.broadcast %cst_14 : f32 to vector<16x128xf32>
    %41 = arith.addf %40, %39 : vector<16x128xf32>
    %42 = arith.mulf %34, %41 : vector<16x128xf32>
    %43 = arith.addf %33, %42 : vector<16x128xf32>
    %44 = arith.fptosi %9 : vector<16x128xf32> to vector<16x128xi32>
    %c1_i32 = arith.constant 1 : i32
    %45 = vector.broadcast %c1_i32 : i32 to vector<16x128xi32>
    %46 = arith.andi %44, %45 : vector<16x128xi32>
    %c1_i32_15 = arith.constant 1 : i32
    %47 = vector.broadcast %c1_i32_15 : i32 to vector<16x128xi32>
    %48 = arith.cmpi eq, %46, %47 : vector<16x128xi32>
    %49 = arith.select %48, %43, %29 : vector<16x128xi1>, vector<16x128xf32>
    %50 = arith.select %48, %29, %43 : vector<16x128xi1>, vector<16x128xf32>
    %c2_i32 = arith.constant 2 : i32
    %51 = vector.broadcast %c2_i32 : i32 to vector<16x128xi32>
    %52 = arith.andi %44, %51 : vector<16x128xi32>
    %c0_i32 = arith.constant 0 : i32
    %53 = vector.broadcast %c0_i32 : i32 to vector<16x128xi32>
    %54 = arith.cmpi ne, %52, %53 : vector<16x128xi32>
    %cst_16 = arith.constant 0.000000e+00 : f32
    %55 = vector.broadcast %cst_16 : f32 to vector<16x128xf32>
    %56 = arith.subf %55, %49 : vector<16x128xf32>
    %57 = arith.select %54, %56, %49 : vector<16x128xi1>, vector<16x128xf32>
    %c1_i32_17 = arith.constant 1 : i32
    %58 = vector.broadcast %c1_i32_17 : i32 to vector<16x128xi32>
    %59 = arith.addi %44, %58 : vector<16x128xi32>
    %c2_i32_18 = arith.constant 2 : i32
    %60 = vector.broadcast %c2_i32_18 : i32 to vector<16x128xi32>
    %61 = arith.andi %59, %60 : vector<16x128xi32>
    %c0_i32_19 = arith.constant 0 : i32
    %62 = vector.broadcast %c0_i32_19 : i32 to vector<16x128xi32>
    %63 = arith.cmpi ne, %61, %62 : vector<16x128xi32>
    %cst_20 = arith.constant 0.000000e+00 : f32
    %64 = vector.broadcast %cst_20 : f32 to vector<16x128xf32>
    %65 = arith.subf %64, %50 : vector<16x128xf32>
    %66 = arith.select %63, %65, %50 : vector<16x128xi1>, vector<16x128xf32>
    %67 = arith.truncf %66 : vector<16x128xf32> to vector<16x128xbf16>
    %c0_21 = arith.constant 0 : index
    %c0_22 = arith.constant 0 : index
    %68 = vector.load %arg3[%c0_21, %c0_22] : memref<16x128xbf16, #tpu.memory_space<vmem>>, vector<16x128xbf16>
    tpu.vector_store %arg3[%c0_21, %c0_22], %67 {strides = array<i32>} : memref<16x128xbf16, #tpu.memory_space<vmem>>, vector<16x128xbf16>,
    %69 = arith.truncf %57 : vector<16x128xf32> to vector<16x128xbf16>
    %c0_23 = arith.constant 0 : index
    %c0_24 = arith.constant 0 : index
    %70 = vector.load %arg4[%c0_23, %c0_24] : memref<16x128xbf16, #tpu.memory_space<vmem>>, vector<16x128xbf16>
    tpu.vector_store %arg4[%c0_23, %c0_24], %69 {strides = array<i32>} : memref<16x128xbf16, #tpu.memory_space<vmem>>, vector<16x128xbf16>,
    return
  }
  func.func @transform_0(%arg0: i32) -> (i32, i32) {
    %c0_i32 = arith.constant 0 : i32
    %c0_i32_0 = arith.constant 0 : i32
    %c0_i32_1 = arith.constant 0 : i32
    return %c0_i32, %c0_i32_0 : i32, i32
  }
  func.func @transform_1(%arg0: i32) -> (i32, i32) {
    %c0_i32 = arith.constant 0 : i32
    %c0_i32_0 = arith.constant 0 : i32
    return %arg0, %c0_i32 : i32, i32
  }
  func.func @transform_2(%arg0: i32) -> (i32, i32) {
    %c0_i32 = arith.constant 0 : i32
    %c0_i32_0 = arith.constant 0 : i32
    return %arg0, %c0_i32 : i32, i32
  }
  func.func @transform_3(%arg0: i32) -> (i32, i32) {
    %c0_i32 = arith.constant 0 : i32
    %c0_i32_0 = arith.constant 0 : i32
    return %arg0, %c0_i32 : i32, i32
  }
}

</mosaic_0001>

<llo_original>
// kernel: tpu_custom_call.1
$region0: #{tpu_custom_call.1}
  #allocation0 [shape = 'u32[]', space=smem, size = 0x4, offset = 0x4, fixed_abs, tag = 'smem constant byte address 0x4 - core index']
  #allocation1 [shape = 'u32[144,128]{1,0:T(1,128)}', space=vmem, size = 0x12000, scoped, tag = 'internal scratch']
  %s0 = inlined_call_operand.vmem [shape: f32[1,128], index: 0, kind: input, shape index: {}]
  %s1 = inlined_call_operand.vmem [shape: f32[16,1], index: 1, kind: input, shape index: {}]
  %s2 = inlined_call_operand.hbm [shape: bf16[16,128], index: 2, kind: output, shape index: {0}]
  %s3 = inlined_call_operand.hbm [shape: bf16[16,128], index: 3, kind: output, shape index: {1}]
  %4 = xla_tuple %s2, %s3
  %s5 = sld [smem:[#allocation0]]
  $region26: #{tpu_custom_call.1} parent=0
    _
  %s7 = ssub.s32 1, %s5
  %s8 = scalar_select 0, %s7, %s5
  $region1: #{tpu_custom_call.1} parent=0
    #allocation2 [shape = 'u8[4096]{0}', space=vmem, size = 0x1000, scoped, tag = 'output window, operand 0, single buffered']
    #allocation3 [shape = 's32[1]{0}', space=sflag, size = 0x4, scoped, tag = 'scoped memory for tpu_custom_call.1']
    #allocation4 [shape = 'u8[4096]{0}', space=vmem, size = 0x1000, scoped, tag = 'output window, operand 1, single buffered']
    #allocation5 [shape = 's32[1]{0}', space=sflag, size = 0x4, scoped, tag = 'scoped memory for tpu_custom_call.1']
    %9 = vsyncpa [#allocation3], 0
    %10 = vsyncpa [#allocation5], 0
    // Predicated region
    $region2: #{tpu_custom_call.1} parent=1 // pred_check
      _
    $region3: #{tpu_custom_call.1} parent=1 // pred_check_branch
      %12 = sbr.rel (0) target = $region5
    $region4: #{tpu_custom_call.1} parent=1 // pred_region
      _
    $region5: #{tpu_custom_call.1} parent=1 // pred_fallthru
      _
    // Predicated region
    $region6: #{tpu_custom_call.1} parent=1 // pred_check
      _
    $region7: #{tpu_custom_call.1} parent=1 // pred_check_branch
      %14 = sbr.rel (0) target = $region9
    $region8: #{tpu_custom_call.1} parent=1 // pred_region
      _
    $region9: #{tpu_custom_call.1} parent=1 // pred_fallthru
      _
    %v15 = vld [vmem:[%s1] sm:$0xff]
    %v16 = vld [vmem:[%s1 + $0x8] sm:$0xff]
    %v17 = vld [vmem:[%s0] sm:$0x1]
    %19 = vset.pattern.permute.xlu0 0
    %20 = vperm.xlu0 %19, %v15
    %v21 = vpop.permute.xlu0 %20
    %24 = vset.pattern.permute.xlu0 0
    %25 = vperm.xlu0 %24, %v16
    %v26 = vpop.permute.xlu0 %25
    %v29 = vlaneseq
    %v30 = vshrl.u32 %v29, 7
    %v31 = vsub.s32 0, %v30
    %v32 = vrot.slane %v17, %v31
    %v34 = vmul.f32 %v21, %v32
    %v35 = vmul.f32 %v26, %v32
    %v36 = vmul.f32 %v34, 0.63661975
    %v37 = vmul.f32 %v35, 0.63661975
    %v38 = vadd.f32 %v36, 0.5
    %v39 = vadd.f32 %v37, 0.5
    %v40 = vfloor.f32 %v38
    %v41 = vfloor.f32 %v39
    %v42 = vmul.f32 %v40, 1.5703125
    %v43 = vmul.f32 %v41, 1.5703125
    %v44 = vsub.f32 %v34, %v42
    %v45 = vsub.f32 %v35, %v43
    %v46 = vmul.f32 %v40, 0.0004837513
    %v47 = vmul.f32 %v41, 0.0004837513
    %v48 = vsub.f32 %v44, %v46
    %v49 = vsub.f32 %v45, %v47
    %v50 = vmul.f32 %v40, 7.54979e-08
    %v51 = vmul.f32 %v41, 7.54979e-08
    %v52 = vsub.f32 %v48, %v50
    %v53 = vsub.f32 %v49, %v51
    %v54 = vmul.f32 %v52, %v52
    %v55 = vmul.f32 %v53, %v53
    %v56 = vmul.f32 %v52, %v54
    %v57 = vmul.f32 %v53, %v55
    %v58 = vmul.f32 %v54, -0.00019515296
    %v59 = vmul.f32 %v55, -0.00019515296
    %v60 = vadd.f32 %v58, 0.008332161
    %v61 = vadd.f32 %v59, 0.008332161
    %v62 = vmul.f32 %v54, %v60
    %v63 = vmul.f32 %v55, %v61
    %v64 = vadd.f32 %v62, -0.16666655
    %v65 = vadd.f32 %v63, -0.16666655
    %v66 = vmul.f32 %v56, %v64
    %v67 = vmul.f32 %v57, %v65
    %v68 = vadd.f32 %v52, %v66
    %v69 = vadd.f32 %v53, %v67
    %v70 = vmul.f32 %v54, 0.5
    %v71 = vmul.f32 %v55, 0.5
    %v72 = vsub.f32 1.0, %v70
    %v73 = vsub.f32 1.0, %v71
    %v74 = vmul.f32 %v54, %v54
    %v75 = vmul.f32 %v55, %v55
    %v76 = vmul.f32 %v54, 2.4433157e-05
    %v77 = vmul.f32 %v55, 2.4433157e-05
    %v78 = vadd.f32 %v76, -0.0013887316
    %v79 = vadd.f32 %v77, -0.0013887316
    %v80 = vmul.f32 %v54, %v78
    %v81 = vmul.f32 %v55, %v79
    %v82 = vadd.f32 %v80, 0.041666646
    %v83 = vadd.f32 %v81, 0.041666646
    %v84 = vmul.f32 %v74, %v82
    %v85 = vmul.f32 %v75, %v83
    %v86 = vadd.f32 %v72, %v84
    %v87 = vadd.f32 %v73, %v85
    %v88 = vcvt.f32.s32.to.zero.pseudo %v40
    %v89 = vcvt.f32.s32.to.zero.pseudo %v41
    %v90 = vand.u32 %v88, 1
    %v91 = vand.u32 %v89, 1
    %vm92 = vcmp.eq.s32.totalorder %v90, 1
    %vm93 = vcmp.eq.s32.totalorder %v91, 1
    %v94 = vsel %vm92, %v86, %v68
    %v95 = vsel %vm93, %v87, %v69
    %v96 = vsel %vm92, %v68, %v86
    %v97 = vsel %vm93, %v69, %v87
    %v98 = vand.u32 %v88, 2
    %v99 = vand.u32 %v89, 2
    %vm100 = vcmp.ne.s32.totalorder %v98, 0
    %vm101 = vcmp.ne.s32.totalorder %v99, 0
    %v102 = vsub.f32 0.0, %v94
    %v103 = vsub.f32 0.0, %v95
    %v104 = vsel %vm100, %v102, %v94
    %v105 = vsel %vm101, %v103, %v95
    %v106 = vadd.s32 %v88, 1
    %v107 = vadd.s32 %v89, 1
    %v108 = vand.u32 %v106, 2
    %v109 = vand.u32 %v107, 2
    %vm110 = vcmp.ne.s32.totalorder %v108, 0
    %vm111 = vcmp.ne.s32.totalorder %v109, 0
    %v112 = vsub.f32 0.0, %v96
    %v113 = vsub.f32 0.0, %v97
    %v114 = vsel %vm110, %v112, %v96
    %v115 = vsel %vm111, %v113, %v97
    %v116 = vpack.c.bf16 %v115, %v114
    %v118 = vunpack.c.l.b16 %v116
    %v119 = vunpack.c.h.b16 %v116
    %v120 = vpack.c.b16 %v118, %v118
    %v121 = vpack.c.b16 %v119, %v119
    %124 = vst [vmem:[#allocation2] sm:$0xf] %v120
    %125 = vst [vmem:[#allocation2 + $0x4] sm:$0xf] %v121
    %v126 = vpack.c.bf16 %v105, %v104
    %v128 = vunpack.c.l.b16 %v126
    %v129 = vunpack.c.h.b16 %v126
    %v130 = vpack.c.b16 %v128, %v128
    %v131 = vpack.c.b16 %v129, %v129
    %134 = vst [vmem:[#allocation4] sm:$0xf] %v130
    %135 = vst [vmem:[#allocation4 + $0x4] sm:$0xf] %v131
    // Predicated region
    $region10: #{tpu_custom_call.1} parent=1 // pred_check
      _
    $region11: #{tpu_custom_call.1} parent=1 // pred_check_branch
      %137 = sbr.rel (0) target = $region13
    $region12: #{tpu_custom_call.1} parent=1 // pred_region
      %s139 = ssub.s32 128, 128
      %140 = vsyncadd [#allocation3], %s139
      %s141 = sshll.u32 [#allocation2], 4
      %s142 = int_to_ptr.vmem [resolvable:$true] %s141
      %147 = dma.vmem_to_hbm [thread:$0]  %s142, 128, %s2, [#allocation3], 64, 64, 4
    $region13: #{tpu_custom_call.1} parent=1 // pred_fallthru
      _
    // Predicated region
    $region14: #{tpu_custom_call.1} parent=1 // pred_check
      _
    $region15: #{tpu_custom_call.1} parent=1 // pred_check_branch
      %149 = sbr.rel (0) target = $region17
    $region16: #{tpu_custom_call.1} parent=1 // pred_region
      %s151 = ssub.s32 128, 128
      %152 = vsyncadd [#allocation5], %s151
      %s153 = sshll.u32 [#allocation4], 4
      %s154 = int_to_ptr.vmem [resolvable:$true] %s153
      %159 = dma.vmem_to_hbm [thread:$0]  %s154, 128, %s3, [#allocation5], 64, 64, 4
    $region17: #{tpu_custom_call.1} parent=1 // pred_fallthru
      _
    // Predicated region
    $region18: #{tpu_custom_call.1} parent=1 // pred_check
      _
    $region19: #{tpu_custom_call.1} parent=1 // pred_check_branch
      %161 = sbr.rel (0) target = $region21
    $region20: #{tpu_custom_call.1} parent=1 // pred_region
      %162 = dma.done [#allocation3], 128
    $region21: #{tpu_custom_call.1} parent=1 // pred_fallthru
      _
    // Predicated region
    $region22: #{tpu_custom_call.1} parent=1 // pred_check
      _
    $region23: #{tpu_custom_call.1} parent=1 // pred_check_branch
      %164 = sbr.rel (0) target = $region25
    $region24: #{tpu_custom_call.1} parent=1 // pred_region
      %165 = dma.done [#allocation5], 128
    $region25: #{tpu_custom_call.1} parent=1 // pred_fallthru
      _
    %166 = vsyncpa [#allocation3], 1
    %167 = vsyncpa [#allocation5], 1

</llo_original>
